<compile_context>
chip_gen: v7x
topology: tpu7x:2x2x1
jax: 0.10.0
libtpu: 0.0.40
codegen_flags: <defaults>
</compile_context>

<pallas_src>
import functools

import numpy as np

import jax
import jax.numpy as jnp
from jax.experimental import pallas as pl
from jax.experimental.pallas import tpu as pltpu

LANES = 128


def _mlp_kernel(x_ref, p_ref, out_ref, *, in_f, h1, h2, h3, w_offs, v_off):
    eps = jnp.float32(1e-5)
    # Only lanes are ever padded, never the batch/sublane dim, so shape[0] is
    # the true batch size (see wrapper).
    batch = x_ref.shape[0]
    inv_b = jnp.float32(1.0 / batch)

    p = p_ref[...]  # [32, 128] packed params: w1;w2;w3;w4 | b1..b4,g1..g3,be1..be3

    b1 = p[v_off + 0:v_off + 1, :]
    b2 = p[v_off + 1:v_off + 2, :]
    b3 = p[v_off + 2:v_off + 3, :]
    b4 = p[v_off + 3:v_off + 4, :]
    g1 = p[v_off + 4:v_off + 5, :]
    g2 = p[v_off + 5:v_off + 6, :]
    g3 = p[v_off + 6:v_off + 7, :]
    be1 = p[v_off + 7:v_off + 8, :]
    be2 = p[v_off + 8:v_off + 9, :]
    be3 = p[v_off + 9:v_off + 10, :]

    def linear(h, w_off, k, bias):
        # VPU broadcast-FMA "matmul": sum_k h[:, k] * W[k, :] + bias.
        # k is 2..4 here, so this beats a near-empty MXU push/pop round trip.
        acc = h[:, 0:1] * p[w_off:w_off + 1, :] + bias
        for i in range(1, k):
            acc = acc + h[:, i:i + 1] * p[w_off + i:w_off + i + 1, :]
        return acc

    def batchnorm(h, gamma, beta):
        # Single reduction pass: var = E[x^2] - mu^2 (post-sigmoid h in (0,1));
        # clamp at 0 so f32 rounding can never produce a negative variance.
        s = jnp.sum(h, axis=0, keepdims=True)
        ss = jnp.sum(h * h, axis=0, keepdims=True)
        mu = s * inv_b
        var = jnp.maximum(ss * inv_b - mu * mu, 0.0)
        return (h - mu) * jax.lax.rsqrt(var + eps) * gamma + beta

    x = x_ref[...]  # natural (batch, in_f) tile; lane padding is implicit
    p1 = jax.nn.sigmoid(linear(x, w_offs[0], in_f, b1))
    p2 = jax.nn.sigmoid(linear(batchnorm(p1, g1, be1), w_offs[1], h1, b2))
    p3 = jax.nn.sigmoid(linear(batchnorm(p2, g2, be2), w_offs[2], h2, b3))
    out_ref[...] = linear(batchnorm(p3, g3, be3), w_offs[3], h3, b4)


def _pack_params(params):
    """One-time host-side packing of all weights/vectors into a [R,128] slab."""
    (w1, b1, g1, be1,
     w2, b2, g2, be2,
     w3, b3, g3, be3,
     w4, b4) = params

    def pad_lanes(a):
        a = np.asarray(a, np.float32).reshape(-1, np.shape(a)[-1])
        out = np.zeros((a.shape[0], LANES), np.float32)
        out[:, :a.shape[1]] = a
        return out

    w_list = (w1, w2, w3, w4)
    w_offs, off = [], 0
    for w in w_list:
        w_offs.append(off)
        off += np.shape(w)[0]
    n_w_rows = off
    v_off = -(-n_w_rows // 8) * 8          # vector block starts sublane-aligned

    vecs = (b1, b2, b3, b4, g1, g2, g3, be1, be2, be3)
    total_rows = -(-(v_off + len(vecs)) // 8) * 8

    slab = np.zeros((total_rows, LANES), np.float32)
    slab[:n_w_rows] = np.concatenate([pad_lanes(w) for w in w_list], axis=0)
    slab[v_off:v_off + len(vecs)] = np.concatenate(
        [pad_lanes(np.reshape(v, (1, -1))) for v in vecs], axis=0)

    dims = (np.shape(w1)[0], np.shape(w1)[1], np.shape(w2)[1],
            np.shape(w3)[1], np.shape(w4)[1])
    return jnp.asarray(slab), tuple(w_offs), int(v_off), dims


def make_sigmoid_class3_norm2(params):
    """Packs params once and returns a jitted forward(x) callable."""
    slab, w_offs, v_off, dims = _pack_params(params)
    in_f, h1, h2, h3, out_f = dims

    kernel = functools.partial(_mlp_kernel, in_f=in_f, h1=h1, h2=h2, h3=h3,
                               w_offs=w_offs, v_off=v_off)
    vmem = pl.BlockSpec(memory_space=pltpu.MemorySpace.VMEM)

    @jax.jit
    def forward(x):
        x = x.astype(jnp.float32)
        batch = x.shape[0]
        out_padded = pl.pallas_call(
            kernel,
            out_shape=jax.ShapeDtypeStruct((batch, LANES), jnp.float32),
            in_specs=[vmem, vmem],
            out_specs=vmem,
        )(x, slab)
        # Lane-dense [B,128] slab from the kernel (unmasked vst); the real
        # out_features slice fuses inside this jit.
        return out_padded[:, :out_f]

    # TODO(synk): for a future large-batch path, keep activations VMEM-resident
    # and loop batch tiles inside one invocation with a two-sweep BN (exact
    # training stats); size the resident batch to 64 MiB on v7x (~100K rows)
    # vs 128 MiB on v5e/v6e, and only add cross-core batch sharding (CMEM stat
    # exchange) once per-core per-layer work is multiple microseconds.
    return forward


def _make_linear_params(key, fan_in, fan_out):
    # Deterministic PyTorch-style init: U(-1/sqrt(fan_in), 1/sqrt(fan_in))
    kw, kb = jax.random.split(key)
    bound = 1.0 / jnp.sqrt(jnp.float32(fan_in))
    w = jax.random.uniform(kw, (fan_in, fan_out), jnp.float32, -bound, bound)
    b = jax.random.uniform(kb, (1, fan_out), jnp.float32, -bound, bound)
    return w, b


def _reference(x, params):
    (w1, b1, g1, be1,
     w2, b2, g2, be2,
     w3, b3, g3, be3,
     w4, b4) = params
    eps = 1e-5

    def bn(h, g, b):
        mu = jnp.mean(h, axis=0, keepdims=True)
        var = jnp.mean((h - mu) ** 2, axis=0, keepdims=True)
        return (h - mu) / jnp.sqrt(var + eps) * g + b

    p1 = jax.nn.sigmoid(x @ w1 + b1)
    p2 = jax.nn.sigmoid(bn(p1, g1, be1) @ w2 + b2)
    p3 = jax.nn.sigmoid(bn(p2, g2, be2) @ w3 + b3)
    return bn(p3, g3, be3) @ w4 + b4


if __name__ == "__main__":
    in_features, n_h1, n_h2, n_h3, out_features = 2, 4, 4, 4, 1
    batch = 8

    key = jax.random.PRNGKey(0)
    kx, k1, k2, k3, k4 = jax.random.split(key, 5)

    x = jax.random.normal(kx, (batch, in_features), jnp.float32)

    w1, b1 = _make_linear_params(k1, in_features, n_h1)
    w2, b2 = _make_linear_params(k2, n_h1, n_h2)
    w3, b3 = _make_linear_params(k3, n_h2, n_h3)
    w4, b4 = _make_linear_params(k4, n_h3, out_features)

    # BatchNorm1d affine params (PyTorch default init: gamma=1, beta=0)
    g1 = jnp.ones((1, n_h1), jnp.float32); be1 = jnp.zeros((1, n_h1), jnp.float32)
    g2 = jnp.ones((1, n_h2), jnp.float32); be2 = jnp.zeros((1, n_h2), jnp.float32)
    g3 = jnp.ones((1, n_h3), jnp.float32); be3 = jnp.zeros((1, n_h3), jnp.float32)

    params = (w1, b1, g1, be1, w2, b2, g2, be2, w3, b3, g3, be3, w4, b4)

    forward = make_sigmoid_class3_norm2(params)   # one-time packing happens here
    out = jax.block_until_ready(forward(x))

    ref = _reference(x, params)
    assert out.shape == (batch, out_features)
    assert jnp.allclose(out, ref, atol=1e-4, rtol=1e-4)
    print("KERNEL_OK")
</pallas_src>

<mosaic_0001>
module attributes {stable_mosaic.version = 11 : i64} {
  func.func @_mlp_kernel(%arg0: memref<8x2xf32, #tpu.memory_space<vmem>>, %arg1: memref<32x128xf32, #tpu.memory_space<vmem>>, %arg2: memref<8x128xf32, #tpu.memory_space<vmem>>) attributes {dimension_semantics = [], scalar_prefetch = 0 : i64, scratch_operands = 0 : i64, tpu.core_type = #tpu.core_type<tc>} {
    %c0 = arith.constant 0 : index
    %c0_0 = arith.constant 0 : index
    %0 = vector.load %arg1[%c0, %c0_0] : memref<32x128xf32, #tpu.memory_space<vmem>>, vector<32x128xf32>
    %1 = vector.extract_strided_slice %0 {offsets = [16, 0], sizes = [1, 128], strides = [1, 1]} : vector<32x128xf32> to vector<1x128xf32>
    %2 = vector.extract_strided_slice %0 {offsets = [17, 0], sizes = [1, 128], strides = [1, 1]} : vector<32x128xf32> to vector<1x128xf32>
    %3 = vector.extract_strided_slice %0 {offsets = [18, 0], sizes = [1, 128], strides = [1, 1]} : vector<32x128xf32> to vector<1x128xf32>
    %4 = vector.extract_strided_slice %0 {offsets = [19, 0], sizes = [1, 128], strides = [1, 1]} : vector<32x128xf32> to vector<1x128xf32>
    %5 = vector.extract_strided_slice %0 {offsets = [20, 0], sizes = [1, 128], strides = [1, 1]} : vector<32x128xf32> to vector<1x128xf32>
    %6 = vector.extract_strided_slice %0 {offsets = [21, 0], sizes = [1, 128], strides = [1, 1]} : vector<32x128xf32> to vector<1x128xf32>
    %7 = vector.extract_strided_slice %0 {offsets = [22, 0], sizes = [1, 128], strides = [1, 1]} : vector<32x128xf32> to vector<1x128xf32>
    %8 = vector.extract_strided_slice %0 {offsets = [23, 0], sizes = [1, 128], strides = [1, 1]} : vector<32x128xf32> to vector<1x128xf32>
    %9 = vector.extract_strided_slice %0 {offsets = [24, 0], sizes = [1, 128], strides = [1, 1]} : vector<32x128xf32> to vector<1x128xf32>
    %10 = vector.extract_strided_slice %0 {offsets = [25, 0], sizes = [1, 128], strides = [1, 1]} : vector<32x128xf32> to vector<1x128xf32>
    %c0_1 = arith.constant 0 : index
    %c0_2 = arith.constant 0 : index
    %11 = vector.load %arg0[%c0_1, %c0_2] : memref<8x2xf32, #tpu.memory_space<vmem>>, vector<8x2xf32>
    %12 = vector.extract_strided_slice %11 {offsets = [0, 0], sizes = [8, 1], strides = [1, 1]} : vector<8x2xf32> to vector<8x1xf32>
    %13 = vector.extract_strided_slice %0 {offsets = [0, 0], sizes = [1, 128], strides = [1, 1]} : vector<32x128xf32> to vector<1x128xf32>
    %14 = vector.broadcast %12 : vector<8x1xf32> to vector<8x128xf32>
    %15 = vector.broadcast %13 : vector<1x128xf32> to vector<8x128xf32>
    %16 = arith.mulf %14, %15 : vector<8x128xf32>
    %17 = vector.broadcast %1 : vector<1x128xf32> to vector<8x128xf32>
    %18 = arith.addf %16, %17 : vector<8x128xf32>
    %19 = vector.extract_strided_slice %11 {offsets = [0, 1], sizes = [8, 1], strides = [1, 1]} : vector<8x2xf32> to vector<8x1xf32>
    %20 = vector.extract_strided_slice %0 {offsets = [1, 0], sizes = [1, 128], strides = [1, 1]} : vector<32x128xf32> to vector<1x128xf32>
    %21 = vector.broadcast %19 : vector<8x1xf32> to vector<8x128xf32>
    %22 = vector.broadcast %20 : vector<1x128xf32> to vector<8x128xf32>
    %23 = arith.mulf %21, %22 : vector<8x128xf32>
    %24 = arith.addf %18, %23 : vector<8x128xf32>
    %25 = arith.negf %24 : vector<8x128xf32>
    %26 = math.exp %25 : vector<8x128xf32>
    %cst = arith.constant 1.000000e+00 : f32
    %27 = vector.broadcast %cst : f32 to vector<8x128xf32>
    %28 = arith.addf %27, %26 : vector<8x128xf32>
    %29 = arith.divf %27, %28 : vector<8x128xf32>
    %cst_3 = arith.constant dense<0.000000e+00> : vector<128xf32>
    %30 = vector.multi_reduction <add>, %29, %cst_3 [0] : vector<8x128xf32> to vector<128xf32>
    %31 = vector.shape_cast %30 : vector<128xf32> to vector<1x128xf32>
    %32 = arith.mulf %29, %29 : vector<8x128xf32>
    %cst_4 = arith.constant dense<0.000000e+00> : vector<128xf32>
    %33 = vector.multi_reduction <add>, %32, %cst_4 [0] : vector<8x128xf32> to vector<128xf32>
    %34 = vector.shape_cast %33 : vector<128xf32> to vector<1x128xf32>
    %cst_5 = arith.constant 1.250000e-01 : f32
    %35 = vector.broadcast %cst_5 : f32 to vector<1x128xf32>
    %36 = arith.mulf %31, %35 : vector<1x128xf32>
    %cst_6 = arith.constant 1.250000e-01 : f32
    %37 = vector.broadcast %cst_6 : f32 to vector<1x128xf32>
    %38 = arith.mulf %34, %37 : vector<1x128xf32>
    %39 = arith.mulf %36, %36 : vector<1x128xf32>
    %40 = arith.subf %38, %39 : vector<1x128xf32>
    %cst_7 = arith.constant 0.000000e+00 : f32
    %41 = vector.broadcast %cst_7 : f32 to vector<1x128xf32>
    %42 = arith.maximumf %40, %41 : vector<1x128xf32>
    %43 = vector.broadcast %36 : vector<1x128xf32> to vector<8x128xf32>
    %44 = arith.subf %29, %43 : vector<8x128xf32>
    %cst_8 = arith.constant 9.99999974E-6 : f32
    %45 = vector.broadcast %cst_8 : f32 to vector<1x128xf32>
    %46 = arith.addf %42, %45 : vector<1x128xf32>
    %47 = math.rsqrt %46 : vector<1x128xf32>
    %48 = vector.broadcast %47 : vector<1x128xf32> to vector<8x128xf32>
    %49 = arith.mulf %44, %48 : vector<8x128xf32>
    %50 = vector.broadcast %5 : vector<1x128xf32> to vector<8x128xf32>
    %51 = arith.mulf %49, %50 : vector<8x128xf32>
    %52 = vector.broadcast %8 : vector<1x128xf32> to vector<8x128xf32>
    %53 = arith.addf %51, %52 : vector<8x128xf32>
    %54 = vector.extract_strided_slice %53 {offsets = [0, 0], sizes = [8, 1], strides = [1, 1]} : vector<8x128xf32> to vector<8x1xf32>
    %55 = vector.extract_strided_slice %0 {offsets = [2, 0], sizes = [1, 128], strides = [1, 1]} : vector<32x128xf32> to vector<1x128xf32>
    %56 = vector.broadcast %54 : vector<8x1xf32> to vector<8x128xf32>
    %57 = vector.broadcast %55 : vector<1x128xf32> to vector<8x128xf32>
    %58 = arith.mulf %56, %57 : vector<8x128xf32>
    %59 = vector.broadcast %2 : vector<1x128xf32> to vector<8x128xf32>
    %60 = arith.addf %58, %59 : vector<8x128xf32>
    %61 = vector.extract_strided_slice %53 {offsets = [0, 1], sizes = [8, 1], strides = [1, 1]} : vector<8x128xf32> to vector<8x1xf32>
    %62 = vector.extract_strided_slice %0 {offsets = [3, 0], sizes = [1, 128], strides = [1, 1]} : vector<32x128xf32> to vector<1x128xf32>
    %63 = vector.broadcast %61 : vector<8x1xf32> to vector<8x128xf32>
    %64 = vector.broadcast %62 : vector<1x128xf32> to vector<8x128xf32>
    %65 = arith.mulf %63, %64 : vector<8x128xf32>
    %66 = arith.addf %60, %65 : vector<8x128xf32>
    %67 = vector.extract_strided_slice %53 {offsets = [0, 2], sizes = [8, 1], strides = [1, 1]} : vector<8x128xf32> to vector<8x1xf32>
    %68 = vector.extract_strided_slice %0 {offsets = [4, 0], sizes = [1, 128], strides = [1, 1]} : vector<32x128xf32> to vector<1x128xf32>
    %69 = vector.broadcast %67 : vector<8x1xf32> to vector<8x128xf32>
    %70 = vector.broadcast %68 : vector<1x128xf32> to vector<8x128xf32>
    %71 = arith.mulf %69, %70 : vector<8x128xf32>
    %72 = arith.addf %66, %71 : vector<8x128xf32>
    %73 = vector.extract_strided_slice %53 {offsets = [0, 3], sizes = [8, 1], strides = [1, 1]} : vector<8x128xf32> to vector<8x1xf32>
    %74 = vector.extract_strided_slice %0 {offsets = [5, 0], sizes = [1, 128], strides = [1, 1]} : vector<32x128xf32> to vector<1x128xf32>
    %75 = vector.broadcast %73 : vector<8x1xf32> to vector<8x128xf32>
    %76 = vector.broadcast %74 : vector<1x128xf32> to vector<8x128xf32>
    %77 = arith.mulf %75, %76 : vector<8x128xf32>
    %78 = arith.addf %72, %77 : vector<8x128xf32>
    %79 = arith.negf %78 : vector<8x128xf32>
    %80 = math.exp %79 : vector<8x128xf32>
    %cst_9 = arith.constant 1.000000e+00 : f32
    %81 = vector.broadcast %cst_9 : f32 to vector<8x128xf32>
    %82 = arith.addf %81, %80 : vector<8x128xf32>
    %83 = arith.divf %81, %82 : vector<8x128xf32>
    %cst_10 = arith.constant dense<0.000000e+00> : vector<128xf32>
    %84 = vector.multi_reduction <add>, %83, %cst_10 [0] : vector<8x128xf32> to vector<128xf32>
    %85 = vector.shape_cast %84 : vector<128xf32> to vector<1x128xf32>
    %86 = arith.mulf %83, %83 : vector<8x128xf32>
    %cst_11 = arith.constant dense<0.000000e+00> : vector<128xf32>
    %87 = vector.multi_reduction <add>, %86, %cst_11 [0] : vector<8x128xf32> to vector<128xf32>
    %88 = vector.shape_cast %87 : vector<128xf32> to vector<1x128xf32>
    %cst_12 = arith.constant 1.250000e-01 : f32
    %89 = vector.broadcast %cst_12 : f32 to vector<1x128xf32>
    %90 = arith.mulf %85, %89 : vector<1x128xf32>
    %cst_13 = arith.constant 1.250000e-01 : f32
    %91 = vector.broadcast %cst_13 : f32 to vector<1x128xf32>
    %92 = arith.mulf %88, %91 : vector<1x128xf32>
    %93 = arith.mulf %90, %90 : vector<1x128xf32>
    %94 = arith.subf %92, %93 : vector<1x128xf32>
    %cst_14 = arith.constant 0.000000e+00 : f32
    %95 = vector.broadcast %cst_14 : f32 to vector<1x128xf32>
    %96 = arith.maximumf %94, %95 : vector<1x128xf32>
    %97 = vector.broadcast %90 : vector<1x128xf32> to vector<8x128xf32>
    %98 = arith.subf %83, %97 : vector<8x128xf32>
    %cst_15 = arith.constant 9.99999974E-6 : f32
    %99 = vector.broadcast %cst_15 : f32 to vector<1x128xf32>
    %100 = arith.addf %96, %99 : vector<1x128xf32>
    %101 = math.rsqrt %100 : vector<1x128xf32>
    %102 = vector.broadcast %101 : vector<1x128xf32> to vector<8x128xf32>
    %103 = arith.mulf %98, %102 : vector<8x128xf32>
    %104 = vector.broadcast %6 : vector<1x128xf32> to vector<8x128xf32>
    %105 = arith.mulf %103, %104 : vector<8x128xf32>
    %106 = vector.broadcast %9 : vector<1x128xf32> to vector<8x128xf32>
    %107 = arith.addf %105, %106 : vector<8x128xf32>
    %108 = vector.extract_strided_slice %107 {offsets = [0, 0], sizes = [8, 1], strides = [1, 1]} : vector<8x128xf32> to vector<8x1xf32>
    %109 = vector.extract_strided_slice %0 {offsets = [6, 0], sizes = [1, 128], strides = [1, 1]} : vector<32x128xf32> to vector<1x128xf32>
    %110 = vector.broadcast %108 : vector<8x1xf32> to vector<8x128xf32>
    %111 = vector.broadcast %109 : vector<1x128xf32> to vector<8x128xf32>
    %112 = arith.mulf %110, %111 : vector<8x128xf32>
    %113 = vector.broadcast %3 : vector<1x128xf32> to vector<8x128xf32>
    %114 = arith.addf %112, %113 : vector<8x128xf32>
    %115 = vector.extract_strided_slice %107 {offsets = [0, 1], sizes = [8, 1], strides = [1, 1]} : vector<8x128xf32> to vector<8x1xf32>
    %116 = vector.extract_strided_slice %0 {offsets = [7, 0], sizes = [1, 128], strides = [1, 1]} : vector<32x128xf32> to vector<1x128xf32>
    %117 = vector.broadcast %115 : vector<8x1xf32> to vector<8x128xf32>
    %118 = vector.broadcast %116 : vector<1x128xf32> to vector<8x128xf32>
    %119 = arith.mulf %117, %118 : vector<8x128xf32>
    %120 = arith.addf %114, %119 : vector<8x128xf32>
    %121 = vector.extract_strided_slice %107 {offsets = [0, 2], sizes = [8, 1], strides = [1, 1]} : vector<8x128xf32> to vector<8x1xf32>
    %122 = vector.extract_strided_slice %0 {offsets = [8, 0], sizes = [1, 128], strides = [1, 1]} : vector<32x128xf32> to vector<1x128xf32>
    %123 = vector.broadcast %121 : vector<8x1xf32> to vector<8x128xf32>
    %124 = vector.broadcast %122 : vector<1x128xf32> to vector<8x128xf32>
    %125 = arith.mulf %123, %124 : vector<8x128xf32>
    %126 = arith.addf %120, %125 : vector<8x128xf32>
    %127 = vector.extract_strided_slice %107 {offsets = [0, 3], sizes = [8, 1], strides = [1, 1]} : vector<8x128xf32> to vector<8x1xf32>
    %128 = vector.extract_strided_slice %0 {offsets = [9, 0], sizes = [1, 128], strides = [1, 1]} : vector<32x128xf32> to vector<1x128xf32>
    %129 = vector.broadcast %127 : vector<8x1xf32> to vector<8x128xf32>
    %130 = vector.broadcast %128 : vector<1x128xf32> to vector<8x128xf32>
    %131 = arith.mulf %129, %130 : vector<8x128xf32>
    %132 = arith.addf %126, %131 : vector<8x128xf32>
    %133 = arith.negf %132 : vector<8x128xf32>
    %134 = math.exp %133 : vector<8x128xf32>
    %cst_16 = arith.constant 1.000000e+00 : f32
    %135 = vector.broadcast %cst_16 : f32 to vector<8x128xf32>
    %136 = arith.addf %135, %134 : vector<8x128xf32>
    %137 = arith.divf %135, %136 : vector<8x128xf32>
    %cst_17 = arith.constant dense<0.000000e+00> : vector<128xf32>
    %138 = vector.multi_reduction <add>, %137, %cst_17 [0] : vector<8x128xf32> to vector<128xf32>
    %139 = vector.shape_cast %138 : vector<128xf32> to vector<1x128xf32>
    %140 = arith.mulf %137, %137 : vector<8x128xf32>
    %cst_18 = arith.constant dense<0.000000e+00> : vector<128xf32>
    %141 = vector.multi_reduction <add>, %140, %cst_18 [0] : vector<8x128xf32> to vector<128xf32>
    %142 = vector.shape_cast %141 : vector<128xf32> to vector<1x128xf32>
    %cst_19 = arith.constant 1.250000e-01 : f32
    %143 = vector.broadcast %cst_19 : f32 to vector<1x128xf32>
    %144 = arith.mulf %139, %143 : vector<1x128xf32>
    %cst_20 = arith.constant 1.250000e-01 : f32
    %145 = vector.broadcast %cst_20 : f32 to vector<1x128xf32>
    %146 = arith.mulf %142, %145 : vector<1x128xf32>
    %147 = arith.mulf %144, %144 : vector<1x128xf32>
    %148 = arith.subf %146, %147 : vector<1x128xf32>
    %cst_21 = arith.constant 0.000000e+00 : f32
    %149 = vector.broadcast %cst_21 : f32 to vector<1x128xf32>
    %150 = arith.maximumf %148, %149 : vector<1x128xf32>
    %151 = vector.broadcast %144 : vector<1x128xf32> to vector<8x128xf32>
    %152 = arith.subf %137, %151 : vector<8x128xf32>
    %cst_22 = arith.constant 9.99999974E-6 : f32
    %153 = vector.broadcast %cst_22 : f32 to vector<1x128xf32>
    %154 = arith.addf %150, %153 : vector<1x128xf32>
    %155 = math.rsqrt %154 : vector<1x128xf32>
    %156 = vector.broadcast %155 : vector<1x128xf32> to vector<8x128xf32>
    %157 = arith.mulf %152, %156 : vector<8x128xf32>
    %158 = vector.broadcast %7 : vector<1x128xf32> to vector<8x128xf32>
    %159 = arith.mulf %157, %158 : vector<8x128xf32>
    %160 = vector.broadcast %10 : vector<1x128xf32> to vector<8x128xf32>
    %161 = arith.addf %159, %160 : vector<8x128xf32>
    %162 = vector.extract_strided_slice %161 {offsets = [0, 0], sizes = [8, 1], strides = [1, 1]} : vector<8x128xf32> to vector<8x1xf32>
    %163 = vector.extract_strided_slice %0 {offsets = [10, 0], sizes = [1, 128], strides = [1, 1]} : vector<32x128xf32> to vector<1x128xf32>
    %164 = vector.broadcast %162 : vector<8x1xf32> to vector<8x128xf32>
    %165 = vector.broadcast %163 : vector<1x128xf32> to vector<8x128xf32>
    %166 = arith.mulf %164, %165 : vector<8x128xf32>
    %167 = vector.broadcast %4 : vector<1x128xf32> to vector<8x128xf32>
    %168 = arith.addf %166, %167 : vector<8x128xf32>
    %169 = vector.extract_strided_slice %161 {offsets = [0, 1], sizes = [8, 1], strides = [1, 1]} : vector<8x128xf32> to vector<8x1xf32>
    %170 = vector.extract_strided_slice %0 {offsets = [11, 0], sizes = [1, 128], strides = [1, 1]} : vector<32x128xf32> to vector<1x128xf32>
    %171 = vector.broadcast %169 : vector<8x1xf32> to vector<8x128xf32>
    %172 = vector.broadcast %170 : vector<1x128xf32> to vector<8x128xf32>
    %173 = arith.mulf %171, %172 : vector<8x128xf32>
    %174 = arith.addf %168, %173 : vector<8x128xf32>
    %175 = vector.extract_strided_slice %161 {offsets = [0, 2], sizes = [8, 1], strides = [1, 1]} : vector<8x128xf32> to vector<8x1xf32>
    %176 = vector.extract_strided_slice %0 {offsets = [12, 0], sizes = [1, 128], strides = [1, 1]} : vector<32x128xf32> to vector<1x128xf32>
    %177 = vector.broadcast %175 : vector<8x1xf32> to vector<8x128xf32>
    %178 = vector.broadcast %176 : vector<1x128xf32> to vector<8x128xf32>
    %179 = arith.mulf %177, %178 : vector<8x128xf32>
    %180 = arith.addf %174, %179 : vector<8x128xf32>
    %181 = vector.extract_strided_slice %161 {offsets = [0, 3], sizes = [8, 1], strides = [1, 1]} : vector<8x128xf32> to vector<8x1xf32>
    %182 = vector.extract_strided_slice %0 {offsets = [13, 0], sizes = [1, 128], strides = [1, 1]} : vector<32x128xf32> to vector<1x128xf32>
    %183 = vector.broadcast %181 : vector<8x1xf32> to vector<8x128xf32>
    %184 = vector.broadcast %182 : vector<1x128xf32> to vector<8x128xf32>
    %185 = arith.mulf %183, %184 : vector<8x128xf32>
    %186 = arith.addf %180, %185 : vector<8x128xf32>
    %c0_23 = arith.constant 0 : index
    %c0_24 = arith.constant 0 : index
    %187 = vector.load %arg2[%c0_23, %c0_24] : memref<8x128xf32, #tpu.memory_space<vmem>>, vector<8x128xf32>
    tpu.vector_store %arg2[%c0_23, %c0_24], %186 {strides = array<i32>} : memref<8x128xf32, #tpu.memory_space<vmem>>, vector<8x128xf32>,
    return
  }
}

</mosaic_0001>

<llo_original>
// kernel: forward.1
$region0: #{forward.1}
  #allocation0 [shape = 'u32[]', space=smem, size = 0x4, offset = 0x4, fixed_abs, tag = 'smem constant byte address 0x4 - core index']
  #allocation1 [shape = 'u32[144,128]{1,0:T(1,128)}', space=vmem, size = 0x12000, scoped, tag = 'internal scratch']
  %s0 = inlined_call_operand.vmem [shape: f32[8,2], index: 0, kind: input, shape index: {}]
  %s1 = inlined_call_operand.hbm [shape: f32[32,128], index: 1, kind: input, shape index: {}]
  %s2 = inlined_call_operand.vmem [shape: f32[8,128], index: 2, kind: output, shape index: {}]
  %s3 = sld [smem:[#allocation0]]
  $region22: #{forward.1} parent=0
    _
  %s5 = ssub.s32 1, %s3
  %s6 = scalar_select 0, %s5, %s3
  $region1: #{forward.1} parent=0
    #allocation2 [shape = 'u8[16384]{0}', space=vmem, size = 0x4000, scoped, tag = 'input window, operand 1, single buffered']
    #allocation3 [shape = 's32[1]{0}', space=sflag, size = 0x4, scoped, tag = 'scoped memory for forward.1']
    %7 = vsyncpa [#allocation3], 0
    // Predicated region
    $region2: #{forward.1} parent=1 // pred_check
      _
    $region3: #{forward.1} parent=1 // pred_check_branch
      %9 = sbr.rel (0) target = $region5
    $region4: #{forward.1} parent=1 // pred_region
      _
    $region5: #{forward.1} parent=1 // pred_fallthru
      _
    // Predicated region
    $region6: #{forward.1} parent=1 // pred_check
      _
    $region7: #{forward.1} parent=1 // pred_check_branch
      %11 = sbr.rel (0) target = $region9
    $region8: #{forward.1} parent=1 // pred_region
      %s13 = ssub.s32 512, 512
      %14 = vsyncadd [#allocation3], %s13
      %s15 = sshll.u32 [#allocation2], 4
      %s16 = int_to_ptr.vmem [resolvable:$true] %s15
      %21 = dma.hbm_to_vmem [thread:$0]  %s1, 512, %s16, [#allocation3], 128, 128, 8
    $region9: #{forward.1} parent=1 // pred_fallthru
      _
    // Predicated region
    $region10: #{forward.1} parent=1 // pred_check
      _
    $region11: #{forward.1} parent=1 // pred_check_branch
      %23 = sbr.rel (0) target = $region13
    $region12: #{forward.1} parent=1 // pred_region
      %24 = dma.done [#allocation3], 512
    $region13: #{forward.1} parent=1 // pred_fallthru
      _
    %v25 = vld [vmem:[#allocation2] sm:$0xff]
    %v26 = vld [vmem:[#allocation2 + $0x8] sm:$0xff]
    %v27 = vld [vmem:[#allocation2 + $0x10] sm:$0xff]
    %v28 = vld [vmem:[#allocation2 + $0x18] sm:$0xff]
    %v29 = vld [vmem:[%s0] sm:$0xff]
    %31 = vset.pattern.permute.xlu0 0
    %32 = vperm.xlu0 %31, %v29
    %v33 = vpop.permute.xlu0 %32
    %v35 = vlaneseq
    %v36 = vshrl.u32 %v35, 7
    %v37 = vsub.s32 0, %v36
    %v38 = vrot.slane %v25, %v37
    %v39 = vmul.f32 %v33, %v38
    %v40 = vlaneseq
    %v41 = vshrl.u32 %v40, 7
    %v42 = vsub.s32 0, %v41
    %v43 = vrot.slane %v27, %v42
    %v44 = vadd.f32 %v39, %v43
    %45 = vset.pattern.permute.xlu0 1
    %46 = vperm.xlu0 %45, %v29
    %v47 = vpop.permute.xlu0 %46
    %v49 = vlaneseq
    %v50 = vshrl.u32 %v49, 7
    %v51 = vsub.s32 1, %v50
    %v52 = vrot.slane %v25, %v51
    %v53 = vmul.f32 %v47, %v52
    %v54 = vadd.f32 %v44, %v53
    %v55 = vxor.u32 %v54, 2147483648
    %v56 = vmul.f32 %v55, 1.442695
    %v57 = vpow.pop %v56
    %v58 = vadd.f32 %v57, 1.0
    %v59 = vrcp.pop %v58
    %v60 = vmul.f32 1.0, %v59
    %v61 = vrot.slane %v60, 4
    %v62 = vadd.f32 %v60, %v61
    %v63 = vrot.slane %v62, 2
    %v64 = vadd.f32 %v62, %v63
    %v65 = vrot.slane %v64, 1
    %v66 = vadd.f32 %v64, %v65
    %v67 = vmul.f32 %v60, %v60
    %v68 = vrot.slane %v67, 4
    %v69 = vadd.f32 %v67, %v68
    %v70 = vrot.slane %v69, 2
    %v71 = vadd.f32 %v69, %v70
    %v72 = vrot.slane %v71, 1
    %v73 = vadd.f32 %v71, %v72
    %v74 = vmul.f32 %v66, 0.125
    %v75 = vmul.f32 %v73, 0.125
    %v76 = vmul.f32 %v74, %v74
    %v77 = vsub.f32 %v75, %v76
    %v78 = vmax.f32 %v77, 0.0
    %v79 = vsub.f32 %v60, %v74
    %v80 = vadd.f32 %v78, 1e-05
    %v81 = vrsqrt.pop %v80
    %v82 = vmul.f32 %v79, %v81
    %v83 = vlaneseq
    %v84 = vshrl.u32 %v83, 7
    %v85 = vsub.s32 4, %v84
    %v86 = vrot.slane %v27, %v85
    %v87 = vmul.f32 %v82, %v86
    %v88 = vlaneseq
    %v89 = vshrl.u32 %v88, 7
    %v90 = vsub.s32 7, %v89
    %v91 = vrot.slane %v27, %v90
    %v92 = vadd.f32 %v87, %v91
    %94 = vset.pattern.permute.xlu0 0
    %95 = vperm.xlu0 %94, %v92
    %v96 = vpop.permute.xlu0 %95
    %v98 = vlaneseq
    %v99 = vshrl.u32 %v98, 7
    %v100 = vsub.s32 2, %v99
    %v101 = vrot.slane %v25, %v100
    %v102 = vmul.f32 %v96, %v101
    %v103 = vlaneseq
    %v104 = vshrl.u32 %v103, 7
    %v105 = vsub.s32 1, %v104
    %v106 = vrot.slane %v27, %v105
    %v107 = vadd.f32 %v102, %v106
    %108 = vset.pattern.permute.xlu0 1
    %109 = vperm.xlu0 %108, %v92
    %v110 = vpop.permute.xlu0 %109
    %v112 = vlaneseq
    %v113 = vshrl.u32 %v112, 7
    %v114 = vsub.s32 3, %v113
    %v115 = vrot.slane %v25, %v114
    %v116 = vmul.f32 %v110, %v115
    %v117 = vadd.f32 %v107, %v116
    %118 = vset.pattern.permute.xlu0 2
    %119 = vperm.xlu0 %118, %v92
    %v120 = vpop.permute.xlu0 %119
    %v122 = vlaneseq
    %v123 = vshrl.u32 %v122, 7
    %v124 = vsub.s32 4, %v123
    %v125 = vrot.slane %v25, %v124
    %v126 = vmul.f32 %v120, %v125
    %v127 = vadd.f32 %v117, %v126
    %128 = vset.pattern.permute.xlu0 3
    %129 = vperm.xlu0 %128, %v92
    %v130 = vpop.permute.xlu0 %129
    %v132 = vlaneseq
    %v133 = vshrl.u32 %v132, 7
    %v134 = vsub.s32 5, %v133
    %v135 = vrot.slane %v25, %v134
    %v136 = vmul.f32 %v130, %v135
    %v137 = vadd.f32 %v127, %v136
    %v138 = vxor.u32 %v137, 2147483648
    %v139 = vmul.f32 %v138, 1.442695
    %v140 = vpow.pop %v139
    %v141 = vadd.f32 %v140, 1.0
    %v142 = vrcp.pop %v141
    %v143 = vmul.f32 1.0, %v142
    %v144 = vrot.slane %v143, 4
    %v145 = vadd.f32 %v143, %v144
    %v146 = vrot.slane %v145, 2
    %v147 = vadd.f32 %v145, %v146
    %v148 = vrot.slane %v147, 1
    %v149 = vadd.f32 %v147, %v148
    %v150 = vmul.f32 %v143, %v143
    %v151 = vrot.slane %v150, 4
    %v152 = vadd.f32 %v150, %v151
    %v153 = vrot.slane %v152, 2
    %v154 = vadd.f32 %v152, %v153
    %v155 = vrot.slane %v154, 1
    %v156 = vadd.f32 %v154, %v155
    %v157 = vmul.f32 %v149, 0.125
    %v158 = vmul.f32 %v156, 0.125
    %v159 = vmul.f32 %v157, %v157
    %v160 = vsub.f32 %v158, %v159
    %v161 = vmax.f32 %v160, 0.0
    %v162 = vsub.f32 %v143, %v157
    %v163 = vadd.f32 %v161, 1e-05
    %v164 = vrsqrt.pop %v163
    %v165 = vmul.f32 %v162, %v164
    %v166 = vlaneseq
    %v167 = vshrl.u32 %v166, 7
    %v168 = vsub.s32 5, %v167
    %v169 = vrot.slane %v27, %v168
    %v170 = vmul.f32 %v165, %v169
    %v171 = vlaneseq
    %v172 = vshrl.u32 %v171, 7
    %v173 = vsub.s32 0, %v172
    %v174 = vrot.slane %v28, %v173
    %v175 = vadd.f32 %v170, %v174
    %177 = vset.pattern.permute.xlu0 0
    %178 = vperm.xlu0 %177, %v175
    %v179 = vpop.permute.xlu0 %178
    %v181 = vlaneseq
    %v182 = vshrl.u32 %v181, 7
    %v183 = vsub.s32 6, %v182
    %v184 = vrot.slane %v25, %v183
    %v185 = vmul.f32 %v179, %v184
    %v186 = vlaneseq
    %v187 = vshrl.u32 %v186, 7
    %v188 = vsub.s32 2, %v187
    %v189 = vrot.slane %v27, %v188
    %v190 = vadd.f32 %v185, %v189
    %191 = vset.pattern.permute.xlu0 1
    %192 = vperm.xlu0 %191, %v175
    %v193 = vpop.permute.xlu0 %192
    %v195 = vlaneseq
    %v196 = vshrl.u32 %v195, 7
    %v197 = vsub.s32 7, %v196
    %v198 = vrot.slane %v25, %v197
    %v199 = vmul.f32 %v193, %v198
    %v200 = vadd.f32 %v190, %v199
    %201 = vset.pattern.permute.xlu0 2
    %202 = vperm.xlu0 %201, %v175
    %v203 = vpop.permute.xlu0 %202
    %v205 = vlaneseq
    %v206 = vshrl.u32 %v205, 7
    %v207 = vsub.s32 0, %v206
    %v208 = vrot.slane %v26, %v207
    %v209 = vmul.f32 %v203, %v208
    %v210 = vadd.f32 %v200, %v209
    %211 = vset.pattern.permute.xlu0 3
    %212 = vperm.xlu0 %211, %v175
    %v213 = vpop.permute.xlu0 %212
    %v215 = vlaneseq
    %v216 = vshrl.u32 %v215, 7
    %v217 = vsub.s32 1, %v216
    %v218 = vrot.slane %v26, %v217
    %v219 = vmul.f32 %v213, %v218
    %v220 = vadd.f32 %v210, %v219
    %v221 = vxor.u32 %v220, 2147483648
    %v222 = vmul.f32 %v221, 1.442695
    %v223 = vpow.pop %v222
    %v224 = vadd.f32 %v223, 1.0
    %v225 = vrcp.pop %v224
    %v226 = vmul.f32 1.0, %v225
    %v227 = vrot.slane %v226, 4
    %v228 = vadd.f32 %v226, %v227
    %v229 = vrot.slane %v228, 2
    %v230 = vadd.f32 %v228, %v229
    %v231 = vrot.slane %v230, 1
    %v232 = vadd.f32 %v230, %v231
    %v233 = vmul.f32 %v226, %v226
    %v234 = vrot.slane %v233, 4
    %v235 = vadd.f32 %v233, %v234
    %v236 = vrot.slane %v235, 2
    %v237 = vadd.f32 %v235, %v236
    %v238 = vrot.slane %v237, 1
    %v239 = vadd.f32 %v237, %v238
    %v240 = vmul.f32 %v232, 0.125
    %v241 = vmul.f32 %v239, 0.125
    %v242 = vmul.f32 %v240, %v240
    %v243 = vsub.f32 %v241, %v242
    %v244 = vmax.f32 %v243, 0.0
    %v245 = vsub.f32 %v226, %v240
    %v246 = vadd.f32 %v244, 1e-05
    %v247 = vrsqrt.pop %v246
    %v248 = vmul.f32 %v245, %v247
    %v249 = vlaneseq
    %v250 = vshrl.u32 %v249, 7
    %v251 = vsub.s32 6, %v250
    %v252 = vrot.slane %v27, %v251
    %v253 = vmul.f32 %v248, %v252
    %v254 = vlaneseq
    %v255 = vshrl.u32 %v254, 7
    %v256 = vsub.s32 1, %v255
    %v257 = vrot.slane %v28, %v256
    %v258 = vadd.f32 %v253, %v257
    %260 = vset.pattern.permute.xlu0 0
    %261 = vperm.xlu0 %260, %v258
    %v262 = vpop.permute.xlu0 %261
    %v264 = vlaneseq
    %v265 = vshrl.u32 %v264, 7
    %v266 = vsub.s32 2, %v265
    %v267 = vrot.slane %v26, %v266
    %v268 = vmul.f32 %v262, %v267
    %v269 = vlaneseq
    %v270 = vshrl.u32 %v269, 7
    %v271 = vsub.s32 3, %v270
    %v272 = vrot.slane %v27, %v271
    %v273 = vadd.f32 %v268, %v272
    %274 = vset.pattern.permute.xlu0 1
    %275 = vperm.xlu0 %274, %v258
    %v276 = vpop.permute.xlu0 %275
    %v278 = vlaneseq
    %v279 = vshrl.u32 %v278, 7
    %v280 = vsub.s32 3, %v279
    %v281 = vrot.slane %v26, %v280
    %v282 = vmul.f32 %v276, %v281
    %v283 = vadd.f32 %v273, %v282
    %284 = vset.pattern.permute.xlu0 2
    %285 = vperm.xlu0 %284, %v258
    %v286 = vpop.permute.xlu0 %285
    %v288 = vlaneseq
    %v289 = vshrl.u32 %v288, 7
    %v290 = vsub.s32 4, %v289
    %v291 = vrot.slane %v26, %v290
    %v292 = vmul.f32 %v286, %v291
    %v293 = vadd.f32 %v283, %v292
    %294 = vset.pattern.permute.xlu0 3
    %295 = vperm.xlu0 %294, %v258
    %v296 = vpop.permute.xlu0 %295
    %v298 = vlaneseq
    %v299 = vshrl.u32 %v298, 7
    %v300 = vsub.s32 5, %v299
    %v301 = vrot.slane %v26, %v300
    %v302 = vmul.f32 %v296, %v301
    %v303 = vadd.f32 %v293, %v302
    %304 = vst [vmem:[%s2] sm:$0xff] %v303
    // Predicated region
    $region14: #{forward.1} parent=1 // pred_check
      _
    $region15: #{forward.1} parent=1 // pred_check_branch
      %306 = sbr.rel (0) target = $region17
    $region16: #{forward.1} parent=1 // pred_region
      _
    $region17: #{forward.1} parent=1 // pred_fallthru
      _
    // Predicated region
    $region18: #{forward.1} parent=1 // pred_check
      _
    $region19: #{forward.1} parent=1 // pred_check_branch
      %308 = sbr.rel (0) target = $region21
    $region20: #{forward.1} parent=1 // pred_region
      _
    $region21: #{forward.1} parent=1 // pred_fallthru
      _
    %309 = vsyncpa [#allocation3], 1

</llo_original>
